<compile_context>
chip_gen: v7x
topology: tpu7x:2x2x1
jax: 0.10.0
libtpu: 0.0.40
codegen_flags: <defaults>
</compile_context>

<pallas_src>
import math
import jax
import jax.numpy as jnp
from jax.experimental import pallas as pl
from jax.experimental.pallas import tpu as pltpu


def lstm_kernel(x_ref, wih_ref, whh_ref, b_ref, wlin_ref, blin_ref,
                out_ref, hs_ref):
    seq = x_ref.shape[0]
    H = whh_ref.shape[0]

    # ---- hoisted input projection + bias: (seq, 4H), f32 -------------------
    # input_size == 1 -> pure VPU broadcast-multiply; at seq=8, 4H=128 this is
    # exactly one f32 vreg.  (General case falls back to one matmul.)
    if x_ref.shape[1] == 1:
        x_proj = x_ref[...] * wih_ref[...] + b_ref[...]
    else:
        x_proj = jnp.dot(x_ref[...].astype(jnp.float32), wih_ref[...],
                         preferred_element_type=jnp.float32) + b_ref[...]

    whh = whh_ref[...]                       # (H, 4H) bf16, loaded once

    h = jnp.zeros((1, H), jnp.float32)       # register-carried state
    c = jnp.zeros((1, H), jnp.float32)

    # seq is static -> fully unrolled; gives the scheduler cross-iteration
    # visibility behind the true h/c dependence chain.
    for t in range(seq):
        if t == 0:
            gates = x_proj[0:1, :]           # h0 == 0: no recurrence term
        else:
            # bf16 x bf16 -> f32: single-pass MXU input on the serial chain.
            gates = x_proj[t:t + 1, :] + jnp.dot(
                h.astype(jnp.bfloat16), whh,
                preferred_element_type=jnp.float32)           # (1, 4H) f32

        sig = jax.nn.sigmoid(gates)          # one EUP pass over full vreg
        tah = jnp.tanh(gates)                # one EUP pass over full vreg
        i_g = sig[:, 0 * H:1 * H]
        f_g = sig[:, 1 * H:2 * H]
        g_g = tah[:, 2 * H:3 * H]
        o_g = sig[:, 3 * H:4 * H]
        # TODO(synk): if the bundle dump shows vrot/vsel lane realignment of
        # these offset slices on the VPU path, move it to the idle XLU with
        # explicit pltpu.roll (or pre-permute gate columns host-side).

        c = f_g * c + i_g * g_g
        h = o_g * jnp.tanh(c)
        hs_ref[pl.ds(t, 1), :] = h           # off-critical-path row store

    # TODO(synk): staging W_hh in MXU weight registers via
    # pltpu.matmul_push_rhs / matmul_acc_lhs / matmul_pop would further cut
    # per-step latency; kept on jnp.dot here for portable, known-good lowering.

    # ---- deferred output Linear: (seq, H) @ (H, 1) -> (seq, 1) --------------
    out_ref[...] = (jnp.dot(hs_ref[...], wlin_ref[...],
                            preferred_element_type=jnp.float32)
                    + blin_ref[...])


def prepare_params(w_ih, w_hh, b_ih, b_hh, w_lin, b_lin):
    """One-time parameter prep into kernel layouts (keep out of the hot path)."""
    H = w_hh.shape[1]
    wih_t = jnp.asarray(w_ih.T, jnp.float32)                    # (input, 4H)
    whh_t = jnp.asarray(w_hh.T, jnp.bfloat16)                   # (H, 4H) bf16 MXU operand
    b = (b_ih + b_hh).reshape(1, 4 * H).astype(jnp.float32)     # folded per-step bias
    wlin_col = jnp.asarray(w_lin.T, jnp.float32)                # (H, 1) column
    blin = b_lin.reshape(1, 1).astype(jnp.float32)              # (1, 1)
    return wih_t, whh_t, b, wlin_col, blin


@jax.jit
def lstm_forward(x, wih_t, whh_t, b, wlin_col, blin):
    """x: (seq, input_size) f32; params pre-laid-out by prepare_params.
    Returns predictions of shape (seq, 1)."""
    seq = x.shape[0]
    H = whh_t.shape[0]
    vmem_spec = pl.BlockSpec(memory_space=pltpu.MemorySpace.VMEM)
    return pl.pallas_call(
        lstm_kernel,
        out_shape=jax.ShapeDtypeStruct((seq, 1), jnp.float32),
        in_specs=[vmem_spec] * 6,
        out_specs=vmem_spec,
        scratch_shapes=[pltpu.VMEM((seq, H), jnp.float32)],
    )(x, wih_t, whh_t, b, wlin_col, blin)


def reference_forward(x, w_ih, w_hh, b_ih, b_hh, w_lin, b_lin, H):
    """Pure-JAX f32 reference mirroring torch.nn.LSTM + Linear (batch=1)."""
    def step(carry, x_t):
        h, c = carry
        gates = x_t @ w_ih.T + b_ih + h @ w_hh.T + b_hh
        i = jax.nn.sigmoid(gates[:, 0 * H:1 * H])
        f = jax.nn.sigmoid(gates[:, 1 * H:2 * H])
        g = jnp.tanh(gates[:, 2 * H:3 * H])
        o = jax.nn.sigmoid(gates[:, 3 * H:4 * H])
        c = f * c + i * g
        h = o * jnp.tanh(c)
        return (h, c), h

    h0 = jnp.zeros((1, H), jnp.float32)
    c0 = jnp.zeros((1, H), jnp.float32)
    (_, _), hs = jax.lax.scan(step, (h0, c0), x[:, None, :])
    hs = hs[:, 0, :]                                  # (seq, H)
    preds = hs @ w_lin.T + b_lin                      # (seq, 1)
    return preds


if __name__ == "__main__":
    # Small shapes consistent with the module's forward: seq=8, input=1,
    # hidden=32 (4H = 128 = one lane row), output=1.
    SEQ, INPUT, HIDDEN, OUTPUT = 8, 1, 32, 1

    key = jax.random.PRNGKey(0)
    k_x, k_wih, k_whh, k_bih, k_bhh, k_wl, k_bl = jax.random.split(key, 7)

    # Deterministic init matching PyTorch's uniform(-1/sqrt(H), 1/sqrt(H))
    bound = 1.0 / math.sqrt(HIDDEN)
    w_ih = jax.random.uniform(k_wih, (4 * HIDDEN, INPUT), jnp.float32, -bound, bound)
    w_hh = jax.random.uniform(k_whh, (4 * HIDDEN, HIDDEN), jnp.float32, -bound, bound)
    b_ih = jax.random.uniform(k_bih, (4 * HIDDEN,), jnp.float32, -bound, bound)
    b_hh = jax.random.uniform(k_bhh, (4 * HIDDEN,), jnp.float32, -bound, bound)
    w_lin = jax.random.uniform(k_wl, (OUTPUT, HIDDEN), jnp.float32, -bound, bound)
    b_lin = jax.random.uniform(k_bl, (OUTPUT,), jnp.float32, -bound, bound)

    # input_seq: 1-D sequence of scalars, viewed as (seq, 1, 1) inside forward
    input_seq = jax.random.normal(k_x, (SEQ,), jnp.float32)
    x = input_seq.reshape(SEQ, INPUT)                 # (seq, input_size)

    # One-time layout prep (off the hot path), then the jitted kernel call.
    params = prepare_params(w_ih, w_hh, b_ih, b_hh, w_lin, b_lin)
    preds = lstm_forward(x, *params)
    preds = jax.block_until_ready(preds)
    result = preds[-1]                                # matches predictions[-1], shape (1,)

    # Tolerance relaxed vs. the pure-f32 reference because the recurrence
    # matmul operands are bf16 (per perf review); elementwise math is f32.
    ref = reference_forward(x, w_ih, w_hh, b_ih, b_hh, w_lin, b_lin, HIDDEN)
    assert jnp.allclose(preds, ref, atol=2e-2, rtol=2e-2), (preds, ref)

    jax.block_until_ready(result)
    print("KERNEL_OK")
</pallas_src>

<mosaic_0001>
module attributes {stable_mosaic.version = 11 : i64} {
  func.func @lstm_kernel(%arg0: memref<8x1xf32, #tpu.memory_space<vmem>>, %arg1: memref<1x128xf32, #tpu.memory_space<vmem>>, %arg2: memref<32x128xbf16, #tpu.memory_space<vmem>>, %arg3: memref<1x128xf32, #tpu.memory_space<vmem>>, %arg4: memref<32x1xf32, #tpu.memory_space<vmem>>, %arg5: memref<1x1xf32, #tpu.memory_space<vmem>>, %arg6: memref<8x1xf32, #tpu.memory_space<vmem>>, %arg7: memref<8x32xf32, #tpu.memory_space<vmem>>) attributes {dimension_semantics = [], scalar_prefetch = 0 : i64, scratch_operands = 1 : i64, tpu.core_type = #tpu.core_type<tc>} {
    %c0 = arith.constant 0 : index
    %c0_0 = arith.constant 0 : index
    %0 = vector.load %arg0[%c0, %c0_0] : memref<8x1xf32, #tpu.memory_space<vmem>>, vector<8x1xf32>
    %c0_1 = arith.constant 0 : index
    %c0_2 = arith.constant 0 : index
    %1 = vector.load %arg1[%c0_1, %c0_2] : memref<1x128xf32, #tpu.memory_space<vmem>>, vector<1x128xf32>
    %2 = vector.broadcast %0 : vector<8x1xf32> to vector<8x128xf32>
    %3 = vector.broadcast %1 : vector<1x128xf32> to vector<8x128xf32>
    %4 = arith.mulf %2, %3 : vector<8x128xf32>
    %c0_3 = arith.constant 0 : index
    %c0_4 = arith.constant 0 : index
    %5 = vector.load %arg3[%c0_3, %c0_4] : memref<1x128xf32, #tpu.memory_space<vmem>>, vector<1x128xf32>
    %6 = vector.broadcast %5 : vector<1x128xf32> to vector<8x128xf32>
    %7 = arith.addf %4, %6 : vector<8x128xf32>
    %c0_5 = arith.constant 0 : index
    %c0_6 = arith.constant 0 : index
    %8 = vector.load %arg2[%c0_5, %c0_6] : memref<32x128xbf16, #tpu.memory_space<vmem>>, vector<32x128xbf16>
    %cst = arith.constant 0.000000e+00 : f32
    %9 = vector.broadcast %cst : f32 to vector<1x32xf32>
    %10 = vector.extract_strided_slice %7 {offsets = [0, 0], sizes = [1, 128], strides = [1, 1]} : vector<8x128xf32> to vector<1x128xf32>
    %11 = arith.negf %10 : vector<1x128xf32>
    %12 = math.exp %11 : vector<1x128xf32>
    %cst_7 = arith.constant 1.000000e+00 : f32
    %13 = vector.broadcast %cst_7 : f32 to vector<1x128xf32>
    %14 = arith.addf %13, %12 : vector<1x128xf32>
    %15 = arith.divf %13, %14 : vector<1x128xf32>
    %16 = math.tanh %10 : vector<1x128xf32>
    %17 = vector.extract_strided_slice %15 {offsets = [0, 0], sizes = [1, 32], strides = [1, 1]} : vector<1x128xf32> to vector<1x32xf32>
    %18 = vector.extract_strided_slice %15 {offsets = [0, 32], sizes = [1, 32], strides = [1, 1]} : vector<1x128xf32> to vector<1x32xf32>
    %19 = vector.extract_strided_slice %16 {offsets = [0, 64], sizes = [1, 32], strides = [1, 1]} : vector<1x128xf32> to vector<1x32xf32>
    %20 = vector.extract_strided_slice %15 {offsets = [0, 96], sizes = [1, 32], strides = [1, 1]} : vector<1x128xf32> to vector<1x32xf32>
    %21 = arith.mulf %18, %9 : vector<1x32xf32>
    %22 = arith.mulf %17, %19 : vector<1x32xf32>
    %23 = arith.addf %21, %22 : vector<1x32xf32>
    %24 = math.tanh %23 : vector<1x32xf32>
    %25 = arith.mulf %20, %24 : vector<1x32xf32>
    %c0_8 = arith.constant 0 : index
    %c0_9 = arith.constant 0 : index
    %26 = vector.load %arg7[%c0_8, %c0_9] : memref<8x32xf32, #tpu.memory_space<vmem>>, vector<1x32xf32>
    tpu.vector_store %arg7[%c0_8, %c0_9], %25 {strides = array<i32>} : memref<8x32xf32, #tpu.memory_space<vmem>>, vector<1x32xf32>,
    %27 = vector.extract_strided_slice %7 {offsets = [1, 0], sizes = [1, 128], strides = [1, 1]} : vector<8x128xf32> to vector<1x128xf32>
    %28 = arith.truncf %25 : vector<1x32xf32> to vector<1x32xbf16>
    %cst_10 = arith.constant dense<0.000000e+00> : vector<1x128xf32>
    %29 = tpu.matmul %28, %8, %cst_10 {dimension_numbers = #tpu.dot_dimension_numbers<[1], [0], [0], [1], [0, 0, 1, 1], [], []>} : vector<1x32xbf16>, vector<32x128xbf16>, vector<1x128xf32> -> vector<1x128xf32>
    %30 = arith.addf %27, %29 : vector<1x128xf32>
    %31 = arith.negf %30 : vector<1x128xf32>
    %32 = math.exp %31 : vector<1x128xf32>
    %cst_11 = arith.constant 1.000000e+00 : f32
    %33 = vector.broadcast %cst_11 : f32 to vector<1x128xf32>
    %34 = arith.addf %33, %32 : vector<1x128xf32>
    %35 = arith.divf %33, %34 : vector<1x128xf32>
    %36 = math.tanh %30 : vector<1x128xf32>
    %37 = vector.extract_strided_slice %35 {offsets = [0, 0], sizes = [1, 32], strides = [1, 1]} : vector<1x128xf32> to vector<1x32xf32>
    %38 = vector.extract_strided_slice %35 {offsets = [0, 32], sizes = [1, 32], strides = [1, 1]} : vector<1x128xf32> to vector<1x32xf32>
    %39 = vector.extract_strided_slice %36 {offsets = [0, 64], sizes = [1, 32], strides = [1, 1]} : vector<1x128xf32> to vector<1x32xf32>
    %40 = vector.extract_strided_slice %35 {offsets = [0, 96], sizes = [1, 32], strides = [1, 1]} : vector<1x128xf32> to vector<1x32xf32>
    %41 = arith.mulf %38, %23 : vector<1x32xf32>
    %42 = arith.mulf %37, %39 : vector<1x32xf32>
    %43 = arith.addf %41, %42 : vector<1x32xf32>
    %44 = math.tanh %43 : vector<1x32xf32>
    %45 = arith.mulf %40, %44 : vector<1x32xf32>
    %c1 = arith.constant 1 : index
    %c0_12 = arith.constant 0 : index
    %46 = vector.load %arg7[%c1, %c0_12] : memref<8x32xf32, #tpu.memory_space<vmem>>, vector<1x32xf32>
    tpu.vector_store %arg7[%c1, %c0_12], %45 {strides = array<i32>} : memref<8x32xf32, #tpu.memory_space<vmem>>, vector<1x32xf32>,
    %47 = vector.extract_strided_slice %7 {offsets = [2, 0], sizes = [1, 128], strides = [1, 1]} : vector<8x128xf32> to vector<1x128xf32>
    %48 = arith.truncf %45 : vector<1x32xf32> to vector<1x32xbf16>
    %cst_13 = arith.constant dense<0.000000e+00> : vector<1x128xf32>
    %49 = tpu.matmul %48, %8, %cst_13 {dimension_numbers = #tpu.dot_dimension_numbers<[1], [0], [0], [1], [0, 0, 1, 1], [], []>} : vector<1x32xbf16>, vector<32x128xbf16>, vector<1x128xf32> -> vector<1x128xf32>
    %50 = arith.addf %47, %49 : vector<1x128xf32>
    %51 = arith.negf %50 : vector<1x128xf32>
    %52 = math.exp %51 : vector<1x128xf32>
    %cst_14 = arith.constant 1.000000e+00 : f32
    %53 = vector.broadcast %cst_14 : f32 to vector<1x128xf32>
    %54 = arith.addf %53, %52 : vector<1x128xf32>
    %55 = arith.divf %53, %54 : vector<1x128xf32>
    %56 = math.tanh %50 : vector<1x128xf32>
    %57 = vector.extract_strided_slice %55 {offsets = [0, 0], sizes = [1, 32], strides = [1, 1]} : vector<1x128xf32> to vector<1x32xf32>
    %58 = vector.extract_strided_slice %55 {offsets = [0, 32], sizes = [1, 32], strides = [1, 1]} : vector<1x128xf32> to vector<1x32xf32>
    %59 = vector.extract_strided_slice %56 {offsets = [0, 64], sizes = [1, 32], strides = [1, 1]} : vector<1x128xf32> to vector<1x32xf32>
    %60 = vector.extract_strided_slice %55 {offsets = [0, 96], sizes = [1, 32], strides = [1, 1]} : vector<1x128xf32> to vector<1x32xf32>
    %61 = arith.mulf %58, %43 : vector<1x32xf32>
    %62 = arith.mulf %57, %59 : vector<1x32xf32>
    %63 = arith.addf %61, %62 : vector<1x32xf32>
    %64 = math.tanh %63 : vector<1x32xf32>
    %65 = arith.mulf %60, %64 : vector<1x32xf32>
    %c2 = arith.constant 2 : index
    %c0_15 = arith.constant 0 : index
    %66 = vector.load %arg7[%c2, %c0_15] : memref<8x32xf32, #tpu.memory_space<vmem>>, vector<1x32xf32>
    tpu.vector_store %arg7[%c2, %c0_15], %65 {strides = array<i32>} : memref<8x32xf32, #tpu.memory_space<vmem>>, vector<1x32xf32>,
    %67 = vector.extract_strided_slice %7 {offsets = [3, 0], sizes = [1, 128], strides = [1, 1]} : vector<8x128xf32> to vector<1x128xf32>
    %68 = arith.truncf %65 : vector<1x32xf32> to vector<1x32xbf16>
    %cst_16 = arith.constant dense<0.000000e+00> : vector<1x128xf32>
    %69 = tpu.matmul %68, %8, %cst_16 {dimension_numbers = #tpu.dot_dimension_numbers<[1], [0], [0], [1], [0, 0, 1, 1], [], []>} : vector<1x32xbf16>, vector<32x128xbf16>, vector<1x128xf32> -> vector<1x128xf32>
    %70 = arith.addf %67, %69 : vector<1x128xf32>
    %71 = arith.negf %70 : vector<1x128xf32>
    %72 = math.exp %71 : vector<1x128xf32>
    %cst_17 = arith.constant 1.000000e+00 : f32
    %73 = vector.broadcast %cst_17 : f32 to vector<1x128xf32>
    %74 = arith.addf %73, %72 : vector<1x128xf32>
    %75 = arith.divf %73, %74 : vector<1x128xf32>
    %76 = math.tanh %70 : vector<1x128xf32>
    %77 = vector.extract_strided_slice %75 {offsets = [0, 0], sizes = [1, 32], strides = [1, 1]} : vector<1x128xf32> to vector<1x32xf32>
    %78 = vector.extract_strided_slice %75 {offsets = [0, 32], sizes = [1, 32], strides = [1, 1]} : vector<1x128xf32> to vector<1x32xf32>
    %79 = vector.extract_strided_slice %76 {offsets = [0, 64], sizes = [1, 32], strides = [1, 1]} : vector<1x128xf32> to vector<1x32xf32>
    %80 = vector.extract_strided_slice %75 {offsets = [0, 96], sizes = [1, 32], strides = [1, 1]} : vector<1x128xf32> to vector<1x32xf32>
    %81 = arith.mulf %78, %63 : vector<1x32xf32>
    %82 = arith.mulf %77, %79 : vector<1x32xf32>
    %83 = arith.addf %81, %82 : vector<1x32xf32>
    %84 = math.tanh %83 : vector<1x32xf32>
    %85 = arith.mulf %80, %84 : vector<1x32xf32>
    %c3 = arith.constant 3 : index
    %c0_18 = arith.constant 0 : index
    %86 = vector.load %arg7[%c3, %c0_18] : memref<8x32xf32, #tpu.memory_space<vmem>>, vector<1x32xf32>
    tpu.vector_store %arg7[%c3, %c0_18], %85 {strides = array<i32>} : memref<8x32xf32, #tpu.memory_space<vmem>>, vector<1x32xf32>,
    %87 = vector.extract_strided_slice %7 {offsets = [4, 0], sizes = [1, 128], strides = [1, 1]} : vector<8x128xf32> to vector<1x128xf32>
    %88 = arith.truncf %85 : vector<1x32xf32> to vector<1x32xbf16>
    %cst_19 = arith.constant dense<0.000000e+00> : vector<1x128xf32>
    %89 = tpu.matmul %88, %8, %cst_19 {dimension_numbers = #tpu.dot_dimension_numbers<[1], [0], [0], [1], [0, 0, 1, 1], [], []>} : vector<1x32xbf16>, vector<32x128xbf16>, vector<1x128xf32> -> vector<1x128xf32>
    %90 = arith.addf %87, %89 : vector<1x128xf32>
    %91 = arith.negf %90 : vector<1x128xf32>
    %92 = math.exp %91 : vector<1x128xf32>
    %cst_20 = arith.constant 1.000000e+00 : f32
    %93 = vector.broadcast %cst_20 : f32 to vector<1x128xf32>
    %94 = arith.addf %93, %92 : vector<1x128xf32>
    %95 = arith.divf %93, %94 : vector<1x128xf32>
    %96 = math.tanh %90 : vector<1x128xf32>
    %97 = vector.extract_strided_slice %95 {offsets = [0, 0], sizes = [1, 32], strides = [1, 1]} : vector<1x128xf32> to vector<1x32xf32>
    %98 = vector.extract_strided_slice %95 {offsets = [0, 32], sizes = [1, 32], strides = [1, 1]} : vector<1x128xf32> to vector<1x32xf32>
    %99 = vector.extract_strided_slice %96 {offsets = [0, 64], sizes = [1, 32], strides = [1, 1]} : vector<1x128xf32> to vector<1x32xf32>
    %100 = vector.extract_strided_slice %95 {offsets = [0, 96], sizes = [1, 32], strides = [1, 1]} : vector<1x128xf32> to vector<1x32xf32>
    %101 = arith.mulf %98, %83 : vector<1x32xf32>
    %102 = arith.mulf %97, %99 : vector<1x32xf32>
    %103 = arith.addf %101, %102 : vector<1x32xf32>
    %104 = math.tanh %103 : vector<1x32xf32>
    %105 = arith.mulf %100, %104 : vector<1x32xf32>
    %c4 = arith.constant 4 : index
    %c0_21 = arith.constant 0 : index
    %106 = vector.load %arg7[%c4, %c0_21] : memref<8x32xf32, #tpu.memory_space<vmem>>, vector<1x32xf32>
    tpu.vector_store %arg7[%c4, %c0_21], %105 {strides = array<i32>} : memref<8x32xf32, #tpu.memory_space<vmem>>, vector<1x32xf32>,
    %107 = vector.extract_strided_slice %7 {offsets = [5, 0], sizes = [1, 128], strides = [1, 1]} : vector<8x128xf32> to vector<1x128xf32>
    %108 = arith.truncf %105 : vector<1x32xf32> to vector<1x32xbf16>
    %cst_22 = arith.constant dense<0.000000e+00> : vector<1x128xf32>
    %109 = tpu.matmul %108, %8, %cst_22 {dimension_numbers = #tpu.dot_dimension_numbers<[1], [0], [0], [1], [0, 0, 1, 1], [], []>} : vector<1x32xbf16>, vector<32x128xbf16>, vector<1x128xf32> -> vector<1x128xf32>
    %110 = arith.addf %107, %109 : vector<1x128xf32>
    %111 = arith.negf %110 : vector<1x128xf32>
    %112 = math.exp %111 : vector<1x128xf32>
    %cst_23 = arith.constant 1.000000e+00 : f32
    %113 = vector.broadcast %cst_23 : f32 to vector<1x128xf32>
    %114 = arith.addf %113, %112 : vector<1x128xf32>
    %115 = arith.divf %113, %114 : vector<1x128xf32>
    %116 = math.tanh %110 : vector<1x128xf32>
    %117 = vector.extract_strided_slice %115 {offsets = [0, 0], sizes = [1, 32], strides = [1, 1]} : vector<1x128xf32> to vector<1x32xf32>
    %118 = vector.extract_strided_slice %115 {offsets = [0, 32], sizes = [1, 32], strides = [1, 1]} : vector<1x128xf32> to vector<1x32xf32>
    %119 = vector.extract_strided_slice %116 {offsets = [0, 64], sizes = [1, 32], strides = [1, 1]} : vector<1x128xf32> to vector<1x32xf32>
    %120 = vector.extract_strided_slice %115 {offsets = [0, 96], sizes = [1, 32], strides = [1, 1]} : vector<1x128xf32> to vector<1x32xf32>
    %121 = arith.mulf %118, %103 : vector<1x32xf32>
    %122 = arith.mulf %117, %119 : vector<1x32xf32>
    %123 = arith.addf %121, %122 : vector<1x32xf32>
    %124 = math.tanh %123 : vector<1x32xf32>
    %125 = arith.mulf %120, %124 : vector<1x32xf32>
    %c5 = arith.constant 5 : index
    %c0_24 = arith.constant 0 : index
    %126 = vector.load %arg7[%c5, %c0_24] : memref<8x32xf32, #tpu.memory_space<vmem>>, vector<1x32xf32>
    tpu.vector_store %arg7[%c5, %c0_24], %125 {strides = array<i32>} : memref<8x32xf32, #tpu.memory_space<vmem>>, vector<1x32xf32>,
    %127 = vector.extract_strided_slice %7 {offsets = [6, 0], sizes = [1, 128], strides = [1, 1]} : vector<8x128xf32> to vector<1x128xf32>
    %128 = arith.truncf %125 : vector<1x32xf32> to vector<1x32xbf16>
    %cst_25 = arith.constant dense<0.000000e+00> : vector<1x128xf32>
    %129 = tpu.matmul %128, %8, %cst_25 {dimension_numbers = #tpu.dot_dimension_numbers<[1], [0], [0], [1], [0, 0, 1, 1], [], []>} : vector<1x32xbf16>, vector<32x128xbf16>, vector<1x128xf32> -> vector<1x128xf32>
    %130 = arith.addf %127, %129 : vector<1x128xf32>
    %131 = arith.negf %130 : vector<1x128xf32>
    %132 = math.exp %131 : vector<1x128xf32>
    %cst_26 = arith.constant 1.000000e+00 : f32
    %133 = vector.broadcast %cst_26 : f32 to vector<1x128xf32>
    %134 = arith.addf %133, %132 : vector<1x128xf32>
    %135 = arith.divf %133, %134 : vector<1x128xf32>
    %136 = math.tanh %130 : vector<1x128xf32>
    %137 = vector.extract_strided_slice %135 {offsets = [0, 0], sizes = [1, 32], strides = [1, 1]} : vector<1x128xf32> to vector<1x32xf32>
    %138 = vector.extract_strided_slice %135 {offsets = [0, 32], sizes = [1, 32], strides = [1, 1]} : vector<1x128xf32> to vector<1x32xf32>
    %139 = vector.extract_strided_slice %136 {offsets = [0, 64], sizes = [1, 32], strides = [1, 1]} : vector<1x128xf32> to vector<1x32xf32>
    %140 = vector.extract_strided_slice %135 {offsets = [0, 96], sizes = [1, 32], strides = [1, 1]} : vector<1x128xf32> to vector<1x32xf32>
    %141 = arith.mulf %138, %123 : vector<1x32xf32>
    %142 = arith.mulf %137, %139 : vector<1x32xf32>
    %143 = arith.addf %141, %142 : vector<1x32xf32>
    %144 = math.tanh %143 : vector<1x32xf32>
    %145 = arith.mulf %140, %144 : vector<1x32xf32>
    %c6 = arith.constant 6 : index
    %c0_27 = arith.constant 0 : index
    %146 = vector.load %arg7[%c6, %c0_27] : memref<8x32xf32, #tpu.memory_space<vmem>>, vector<1x32xf32>
    tpu.vector_store %arg7[%c6, %c0_27], %145 {strides = array<i32>} : memref<8x32xf32, #tpu.memory_space<vmem>>, vector<1x32xf32>,
    %147 = vector.extract_strided_slice %7 {offsets = [7, 0], sizes = [1, 128], strides = [1, 1]} : vector<8x128xf32> to vector<1x128xf32>
    %148 = arith.truncf %145 : vector<1x32xf32> to vector<1x32xbf16>
    %cst_28 = arith.constant dense<0.000000e+00> : vector<1x128xf32>
    %149 = tpu.matmul %148, %8, %cst_28 {dimension_numbers = #tpu.dot_dimension_numbers<[1], [0], [0], [1], [0, 0, 1, 1], [], []>} : vector<1x32xbf16>, vector<32x128xbf16>, vector<1x128xf32> -> vector<1x128xf32>
    %150 = arith.addf %147, %149 : vector<1x128xf32>
    %151 = arith.negf %150 : vector<1x128xf32>
    %152 = math.exp %151 : vector<1x128xf32>
    %cst_29 = arith.constant 1.000000e+00 : f32
    %153 = vector.broadcast %cst_29 : f32 to vector<1x128xf32>
    %154 = arith.addf %153, %152 : vector<1x128xf32>
    %155 = arith.divf %153, %154 : vector<1x128xf32>
    %156 = math.tanh %150 : vector<1x128xf32>
    %157 = vector.extract_strided_slice %155 {offsets = [0, 0], sizes = [1, 32], strides = [1, 1]} : vector<1x128xf32> to vector<1x32xf32>
    %158 = vector.extract_strided_slice %155 {offsets = [0, 32], sizes = [1, 32], strides = [1, 1]} : vector<1x128xf32> to vector<1x32xf32>
    %159 = vector.extract_strided_slice %156 {offsets = [0, 64], sizes = [1, 32], strides = [1, 1]} : vector<1x128xf32> to vector<1x32xf32>
    %160 = vector.extract_strided_slice %155 {offsets = [0, 96], sizes = [1, 32], strides = [1, 1]} : vector<1x128xf32> to vector<1x32xf32>
    %161 = arith.mulf %158, %143 : vector<1x32xf32>
    %162 = arith.mulf %157, %159 : vector<1x32xf32>
    %163 = arith.addf %161, %162 : vector<1x32xf32>
    %164 = math.tanh %163 : vector<1x32xf32>
    %165 = arith.mulf %160, %164 : vector<1x32xf32>
    %c7 = arith.constant 7 : index
    %c0_30 = arith.constant 0 : index
    %166 = vector.load %arg7[%c7, %c0_30] : memref<8x32xf32, #tpu.memory_space<vmem>>, vector<1x32xf32>
    tpu.vector_store %arg7[%c7, %c0_30], %165 {strides = array<i32>} : memref<8x32xf32, #tpu.memory_space<vmem>>, vector<1x32xf32>,
    %c0_31 = arith.constant 0 : index
    %c0_32 = arith.constant 0 : index
    %167 = vector.load %arg7[%c0_31, %c0_32] : memref<8x32xf32, #tpu.memory_space<vmem>>, vector<8x32xf32>
    %c0_33 = arith.constant 0 : index
    %c0_34 = arith.constant 0 : index
    %168 = vector.load %arg4[%c0_33, %c0_34] : memref<32x1xf32, #tpu.memory_space<vmem>>, vector<32x1xf32>
    %cst_35 = arith.constant dense<0.000000e+00> : vector<8x1xf32>
    %169 = tpu.matmul %167, %168, %cst_35 {dimension_numbers = #tpu.dot_dimension_numbers<[1], [0], [0], [1], [0, 0, 1, 1], [], []>} : vector<8x32xf32>, vector<32x1xf32>, vector<8x1xf32> -> vector<8x1xf32>
    %c0_36 = arith.constant 0 : index
    %c0_37 = arith.constant 0 : index
    %170 = vector.load %arg5[%c0_36, %c0_37] : memref<1x1xf32, #tpu.memory_space<vmem>>, vector<1x1xf32>
    %171 = vector.broadcast %170 : vector<1x1xf32> to vector<8x1xf32>
    %172 = arith.addf %169, %171 : vector<8x1xf32>
    %c0_38 = arith.constant 0 : index
    %c0_39 = arith.constant 0 : index
    %173 = vector.load %arg6[%c0_38, %c0_39] : memref<8x1xf32, #tpu.memory_space<vmem>>, vector<8x1xf32>
    tpu.vector_store %arg6[%c0_38, %c0_39], %172 {strides = array<i32>} : memref<8x1xf32, #tpu.memory_space<vmem>>, vector<8x1xf32>,
    return
  }
}

</mosaic_0001>

<llo_original>
// kernel: lstm_forward.1
$region0: #{lstm_forward.1}
  #allocation0 [shape = 'u32[]', space=smem, size = 0x4, offset = 0x4, fixed_abs, tag = 'smem constant byte address 0x4 - core index']
  #allocation1 [shape = 'u32[144,128]{1,0:T(1,128)}', space=vmem, size = 0x12000, scoped, tag = 'internal scratch']
  #allocation2 [shape = 'f32[8,32]{1,0:T(8,128)}', space=vmem, size = 0x1000, scoped, tag = 'scratch operand']
  #allocation3 [shape = 'f32[1,1]{1,0:T(1,128)S(1)}', space=vmem, size = 0x200, scoped, tag = 'scoped memory for lstm_forward.1']
  %s0 = inlined_call_operand.vmem [shape: f32[8,1], index: 0, kind: input, shape index: {}]
  %s1 = inlined_call_operand.vmem [shape: f32[1,128], index: 1, kind: input, shape index: {}]
  %s2 = inlined_call_operand.vmem [shape: bf16[32,128], index: 2, kind: input, shape index: {}]
  %s3 = inlined_call_operand.vmem [shape: f32[1,128], index: 3, kind: input, shape index: {}]
  %s4 = inlined_call_operand.vmem [shape: f32[32,1], index: 4, kind: input, shape index: {}]
  %s5 = inlined_call_operand.<no memory space> [shape: f32[1,1], index: 5, kind: input, shape index: {}]
  %s6 = inlined_call_operand.vmem [shape: f32[8,1], index: 6, kind: output, shape index: {}]
  %s7 = sld [smem:[#allocation0]]
  $region34: #{lstm_forward.1} parent=0
    _
  %s9 = ssub.s32 1, %s7
  %s10 = scalar_select 0, %s9, %s7
  %v11 = vstv %s5
  %12 = vst [vmem:[#allocation3] sm:$0x1] %v11
  // Predicated region
  $region2: #{lstm_forward.1} parent=0 // pred_check
    _
  $region3: #{lstm_forward.1} parent=0 // pred_check_branch
    %14 = sbr.rel (0) target = $region5
  $region4: #{lstm_forward.1} parent=0 // pred_region
    _
  $region5: #{lstm_forward.1} parent=0 // pred_fallthru
    _
  // Predicated region
  $region6: #{lstm_forward.1} parent=0 // pred_check
    _
  $region7: #{lstm_forward.1} parent=0 // pred_check_branch
    %16 = sbr.rel (0) target = $region9
  $region8: #{lstm_forward.1} parent=0 // pred_region
    _
  $region9: #{lstm_forward.1} parent=0 // pred_fallthru
    _
  // Predicated region
  $region10: #{lstm_forward.1} parent=0 // pred_check
    _
  $region11: #{lstm_forward.1} parent=0 // pred_check_branch
    %18 = sbr.rel (0) target = $region13
  $region12: #{lstm_forward.1} parent=0 // pred_region
    _
  $region13: #{lstm_forward.1} parent=0 // pred_fallthru
    _
  // Predicated region
  $region14: #{lstm_forward.1} parent=0 // pred_check
    _
  $region15: #{lstm_forward.1} parent=0 // pred_check_branch
    %20 = sbr.rel (0) target = $region17
  $region16: #{lstm_forward.1} parent=0 // pred_region
    _
  $region17: #{lstm_forward.1} parent=0 // pred_fallthru
    _
  // Predicated region
  $region18: #{lstm_forward.1} parent=0 // pred_check
    _
  $region19: #{lstm_forward.1} parent=0 // pred_check_branch
    %22 = sbr.rel (0) target = $region21
  $region20: #{lstm_forward.1} parent=0 // pred_region
    _
  $region21: #{lstm_forward.1} parent=0 // pred_fallthru
    _
  // Predicated region
  $region22: #{lstm_forward.1} parent=0 // pred_check
    _
  $region23: #{lstm_forward.1} parent=0 // pred_check_branch
    %24 = sbr.rel (0) target = $region25
  $region24: #{lstm_forward.1} parent=0 // pred_region
    _
  $region25: #{lstm_forward.1} parent=0 // pred_fallthru
    _
  %v26 = vld [vmem:[%s0] sm:$0xff]
  %v27 = vld [vmem:[%s1] sm:$0x1]
  %29 = vset.pattern.permute.xlu0 0
  %30 = vperm.xlu0 %29, %v26
  %v31 = vpop.permute.xlu0 %30
  %v34 = vlaneseq
  %v35 = vshrl.u32 %v34, 7
  %v36 = vsub.s32 0, %v35
  %v37 = vrot.slane %v27, %v36
  %v39 = vmul.f32 %v31, %v37
  %v40 = vld [vmem:[%s3] sm:$0x1]
  %v42 = vlaneseq
  %v43 = vshrl.u32 %v42, 7
  %v44 = vsub.s32 0, %v43
  %v45 = vrot.slane %v40, %v44
  %v47 = vadd.f32 %v39, %v45
  %v48 = vld [vmem:[%s2] sm:$0xf]
  %v49 = vld [vmem:[%s2 + $0x4] sm:$0xf]
  %v50 = vld [vmem:[%s2 + $0x8] sm:$0xf]
  %v51 = vld [vmem:[%s2 + $0xc] sm:$0xf]
  %v52 = vxor.u32 %v47, 2147483648
  %v53 = vmul.f32 %v52, 1.442695
  %v54 = vpow.pop %v53
  %v55 = vadd.f32 %v54, 1.0
  %v56 = vrcp.pop %v55
  %v57 = vmul.f32 1.0, %v56
  %v58 = vtanh.pop %v47
  %v59 = vmul.f32 %v57, 0.0
  %61 = vrot.lane.b32.xlu0 %v58, 64
  %v62 = vpop.permute.xlu0 %61
  %v64 = vmul.f32 %v57, %v62
  %66 = vrot.lane.b32.xlu0 %v64, 32
  %v67 = vpop.permute.xlu0 %66
  %v69 = vadd.f32 %v59, %v67
  %v70 = vtanh.pop %v69
  %72 = vrot.lane.b32.xlu0 %v70, 64
  %v73 = vpop.permute.xlu0 %72
  %v75 = vmul.f32 %v57, %v73
  %77 = vrot.lane.b32.xlu0 %v75, 32
  %v78 = vpop.permute.xlu0 %77
  %vm80 = vcmask 253952
  %81 = vst.msk [vmem:[#allocation2] sm:$0x1] %vm80, %v78
  %v82 = vpack.c.bf16 %v75, %v75
  %84 = vrot.lane.b32.xlu0 %v82, 32
  %v85 = vpop.permute.xlu0 %84
  %v90 = vunpack.c.l.b16 %v48
  %v91 = vunpack.c.l.b16 %v49
  %v92 = vunpack.c.l.b16 %v50
  %v93 = vunpack.c.l.b16 %v51
  %v94 = vpack.c.b16 %v91, %v90
  %v95 = vpack.c.b16 %v93, %v92
  %vm98 = vcmask 261120
  %v100 = vsel %vm98, %v85, 0
  %102 = vmatprep.subr.bf16.mxu0 0
  %103 = vmatpush1.bf16.msra.mxu0 %v94
  %104 = vmatprep.subr.bf16.mxu0 0
  %105 = vmatpush1.bf16.msra.mxu0 %v95
  %106 = vmatprep.subr.bf16.mxu0 0
  %107 = vmatpush1.bf16.msra.mxu0 0
  %108 = vmatprep.subr.bf16.mxu0 0
  %109 = vmatpush1.bf16.msra.mxu0 0
  %110 = vmatprep.subr.bf16.mxu0 0
  %111 = vmatpush1.bf16.msra.mxu0 0
  %112 = vmatprep.subr.bf16.mxu0 0
  %113 = vmatpush1.bf16.msra.mxu0 0
  %114 = vmatprep.subr.bf16.mxu0 0
  %115 = vmatpush1.bf16.msra.mxu0 0
  %116 = vmatprep.subr.bf16.mxu0 0
  %117 = vmatpush1.bf16.msra.mxu0 0
  %118 = vmatprep.subr.bf16.mxu0 0
  %119 = vmatpush1.bf16.msra.mxu0 0
  %120 = vmatprep.subr.bf16.mxu0 0
  %121 = vmatpush1.bf16.msra.mxu0 0
  %122 = vmatprep.subr.bf16.mxu0 0
  %123 = vmatpush1.bf16.msra.mxu0 0
  %124 = vmatprep.subr.bf16.mxu0 0
  %125 = vmatpush1.bf16.msra.mxu0 0
  %126 = vmatprep.subr.bf16.mxu0 0
  %127 = vmatpush1.bf16.msra.mxu0 0
  %128 = vmatprep.subr.bf16.mxu0 0
  %129 = vmatpush1.bf16.msra.mxu0 0
  %130 = vmatprep.subr.bf16.mxu0 0
  %131 = vmatpush1.bf16.msra.mxu0 0
  %132 = vmatprep.subr.bf16.mxu0 0
  %133 = vmatpush1.bf16.msra.mxu0 0
  %134 = vmatprep.mubr.bf16.mxu0 0
  %135 = vmatmul.mubr.bf16.gmra.mrb[0].mxu0 %v100
  %v136 = vpop.f32.mrb[0].mxu0
  %v137 = vadd.f32 0.0, %v136
  %v138 = vpop.f32.mrb[0].mxu0
  %v139 = vpop.f32.mrb[0].mxu0
  %v140 = vpop.f32.mrb[0].mxu0
  %141 = vdwg.mxu0
  %v143 = vrot.slane %v137, 7
  %v145 = vadd.f32 %v47, %v143
  %v146 = vxor.u32 %v145, 2147483648
  %v147 = vmul.f32 %v146, 1.442695
  %v148 = vpow.pop %v147
  %v149 = vadd.f32 %v148, 1.0
  %v150 = vrcp.pop %v149
  %v151 = vmul.f32 1.0, %v150
  %v152 = vtanh.pop %v145
  %v154 = vrot.slane %v69, 7
  %v156 = vmul.f32 %v151, %v154
  %158 = vrot.lane.b32.xlu0 %v152, 64
  %v159 = vpop.permute.xlu0 %158
  %v161 = vmul.f32 %v151, %v159
  %163 = vrot.lane.b32.xlu0 %v161, 32
  %v164 = vpop.permute.xlu0 %163
  %v166 = vadd.f32 %v156, %v164
  %v167 = vtanh.pop %v166
  %169 = vrot.lane.b32.xlu0 %v167, 64
  %v170 = vpop.permute.xlu0 %169
  %v172 = vmul.f32 %v151, %v170
  %174 = vrot.lane.b32.xlu0 %v172, 32
  %v175 = vpop.permute.xlu0 %174
  %vm177 = vcmask 254977
  %178 = vst.msk [vmem:[#allocation2] sm:$0x2] %vm177, %v175
  %v179 = vpack.c.bf16 %v172, %v172
  %v181 = vshrl.u32 %v179, 16
  %183 = vrot.lane.b32.xlu0 %v181, 32
  %v184 = vpop.permute.xlu0 %183
  %v186 = vsel %vm98, %v184, 0
  %188 = vmatprep.subr.bf16.mxu0 0
  %189 = vmatpush1.bf16.msra.mxu0 %v94
  %190 = vmatprep.subr.bf16.mxu0 0
  %191 = vmatpush1.bf16.msra.mxu0 %v95
  %192 = vmatprep.subr.bf16.mxu0 0
  %193 = vmatpush1.bf16.msra.mxu0 0
  %194 = vmatprep.subr.bf16.mxu0 0
  %195 = vmatpush1.bf16.msra.mxu0 0
  %196 = vmatprep.subr.bf16.mxu0 0
  %197 = vmatpush1.bf16.msra.mxu0 0
  %198 = vmatprep.subr.bf16.mxu0 0
  %199 = vmatpush1.bf16.msra.mxu0 0
  %200 = vmatprep.subr.bf16.mxu0 0
  %201 = vmatpush1.bf16.msra.mxu0 0
  %202 = vmatprep.subr.bf16.mxu0 0
  %203 = vmatpush1.bf16.msra.mxu0 0
  %204 = vmatprep.subr.bf16.mxu0 0
  %205 = vmatpush1.bf16.msra.mxu0 0
  %206 = vmatprep.subr.bf16.mxu0 0
  %207 = vmatpush1.bf16.msra.mxu0 0
  %208 = vmatprep.subr.bf16.mxu0 0
  %209 = vmatpush1.bf16.msra.mxu0 0
  %210 = vmatprep.subr.bf16.mxu0 0
  %211 = vmatpush1.bf16.msra.mxu0 0
  %212 = vmatprep.subr.bf16.mxu0 0
  %213 = vmatpush1.bf16.msra.mxu0 0
  %214 = vmatprep.subr.bf16.mxu0 0
  %215 = vmatpush1.bf16.msra.mxu0 0
  %216 = vmatprep.subr.bf16.mxu0 0
  %217 = vmatpush1.bf16.msra.mxu0 0
  %218 = vmatprep.subr.bf16.mxu0 0
  %219 = vmatpush1.bf16.msra.mxu0 0
  %220 = vmatprep.mubr.bf16.mxu0 0
  %221 = vmatmul.mubr.bf16.gmra.mrb[0].mxu0 %v186
  %v222 = vpop.f32.mrb[0].mxu0
  %v223 = vadd.f32 0.0, %v222
  %v224 = vpop.f32.mrb[0].mxu0
  %v225 = vpop.f32.mrb[0].mxu0
  %v226 = vpop.f32.mrb[0].mxu0
  %227 = vdwg.mxu0
  %v229 = vrot.slane %v223, 6
  %v231 = vadd.f32 %v47, %v229
  %v232 = vxor.u32 %v231, 2147483648
  %v233 = vmul.f32 %v232, 1.442695
  %v234 = vpow.pop %v233
  %v235 = vadd.f32 %v234, 1.0
  %v236 = vrcp.pop %v235
  %v237 = vmul.f32 1.0, %v236
  %v238 = vtanh.pop %v231
  %v240 = vrot.slane %v166, 7
  %v242 = vmul.f32 %v237, %v240
  %244 = vrot.lane.b32.xlu0 %v238, 64
  %v245 = vpop.permute.xlu0 %244
  %v247 = vmul.f32 %v237, %v245
  %249 = vrot.lane.b32.xlu0 %v247, 32
  %v250 = vpop.permute.xlu0 %249
  %v252 = vadd.f32 %v242, %v250
  %v253 = vtanh.pop %v252
  %255 = vrot.lane.b32.xlu0 %v253, 64
  %v256 = vpop.permute.xlu0 %255
  %v258 = vmul.f32 %v237, %v256
  %260 = vrot.lane.b32.xlu0 %v258, 32
  %v261 = vpop.permute.xlu0 %260
  %vm263 = vcmask 256002
  %264 = vst.msk [vmem:[#allocation2] sm:$0x4] %vm263, %v261
  %v265 = vpack.c.bf16 %v258, %v258
  %v267 = vrot.slane %v265, 1
  %268 = vrot.lane.b32.xlu0 %v267, 32
  %v269 = vpop.permute.xlu0 %268
  %v271 = vsel %vm98, %v269, 0
  %273 = vmatprep.subr.bf16.mxu0 0
  %274 = vmatpush1.bf16.msra.mxu0 %v94
  %275 = vmatprep.subr.bf16.mxu0 0
  %276 = vmatpush1.bf16.msra.mxu0 %v95
  %277 = vmatprep.subr.bf16.mxu0 0
  %278 = vmatpush1.bf16.msra.mxu0 0
  %279 = vmatprep.subr.bf16.mxu0 0
  %280 = vmatpush1.bf16.msra.mxu0 0
  %281 = vmatprep.subr.bf16.mxu0 0
  %282 = vmatpush1.bf16.msra.mxu0 0
  %283 = vmatprep.subr.bf16.mxu0 0
  %284 = vmatpush1.bf16.msra.mxu0 0
  %285 = vmatprep.subr.bf16.mxu0 0
  %286 = vmatpush1.bf16.msra.mxu0 0
  %287 = vmatprep.subr.bf16.mxu0 0
  %288 = vmatpush1.bf16.msra.mxu0 0
  %289 = vmatprep.subr.bf16.mxu0 0
  %290 = vmatpush1.bf16.msra.mxu0 0
  %291 = vmatprep.subr.bf16.mxu0 0
  %292 = vmatpush1.bf16.msra.mxu0 0
  %293 = vmatprep.subr.bf16.mxu0 0
  %294 = vmatpush1.bf16.msra.mxu0 0
  %295 = vmatprep.subr.bf16.mxu0 0
  %296 = vmatpush1.bf16.msra.mxu0 0
  %297 = vmatprep.subr.bf16.mxu0 0
  %298 = vmatpush1.bf16.msra.mxu0 0
  %299 = vmatprep.subr.bf16.mxu0 0
  %300 = vmatpush1.bf16.msra.mxu0 0
  %301 = vmatprep.subr.bf16.mxu0 0
  %302 = vmatpush1.bf16.msra.mxu0 0
  %303 = vmatprep.subr.bf16.mxu0 0
  %304 = vmatpush1.bf16.msra.mxu0 0
  %305 = vmatprep.mubr.bf16.mxu0 0
  %306 = vmatmul.mubr.bf16.gmra.mrb[0].mxu0 %v271
  %v307 = vpop.f32.mrb[0].mxu0
  %v308 = vadd.f32 0.0, %v307
  %v309 = vpop.f32.mrb[0].mxu0
  %v310 = vpop.f32.mrb[0].mxu0
  %v311 = vpop.f32.mrb[0].mxu0
  %312 = vdwg.mxu0
  %v314 = vrot.slane %v308, 5
  %v316 = vadd.f32 %v47, %v314
  %v317 = vxor.u32 %v316, 2147483648
  %v318 = vmul.f32 %v317, 1.442695
  %v319 = vpow.pop %v318
  %v320 = vadd.f32 %v319, 1.0
  %v321 = vrcp.pop %v320
  %v322 = vmul.f32 1.0, %v321
  %v323 = vtanh.pop %v316
  %v325 = vrot.slane %v252, 7
  %v327 = vmul.f32 %v322, %v325
  %329 = vrot.lane.b32.xlu0 %v323, 64
  %v330 = vpop.permute.xlu0 %329
  %v332 = vmul.f32 %v322, %v330
  %334 = vrot.lane.b32.xlu0 %v332, 32
  %v335 = vpop.permute.xlu0 %334
  %v337 = vadd.f32 %v327, %v335
  %v338 = vtanh.pop %v337
  %340 = vrot.lane.b32.xlu0 %v338, 64
  %v341 = vpop.permute.xlu0 %340
  %v343 = vmul.f32 %v322, %v341
  %345 = vrot.lane.b32.xlu0 %v343, 32
  %v346 = vpop.permute.xlu0 %345
  %vm348 = vcmask 257027
  %349 = vst.msk [vmem:[#allocation2] sm:$0x8] %vm348, %v346
  %v350 = vpack.c.bf16 %v343, %v343
  %v352 = vshrl.u32 %v350, 16
  %v354 = vrot.slane %v352, 1
  %355 = vrot.lane.b32.xlu0 %v354, 32
  %v356 = vpop.permute.xlu0 %355
  %v358 = vsel %vm98, %v356, 0
  %360 = vmatprep.subr.bf16.mxu0 0
  %361 = vmatpush1.bf16.msra.mxu0 %v94
  %362 = vmatprep.subr.bf16.mxu0 0
  %363 = vmatpush1.bf16.msra.mxu0 %v95
  %364 = vmatprep.subr.bf16.mxu0 0
  %365 = vmatpush1.bf16.msra.mxu0 0
  %366 = vmatprep.subr.bf16.mxu0 0
  %367 = vmatpush1.bf16.msra.mxu0 0
  %368 = vmatprep.subr.bf16.mxu0 0
  %369 = vmatpush1.bf16.msra.mxu0 0
  %370 = vmatprep.subr.bf16.mxu0 0
  %371 = vmatpush1.bf16.msra.mxu0 0
  %372 = vmatprep.subr.bf16.mxu0 0
  %373 = vmatpush1.bf16.msra.mxu0 0
  %374 = vmatprep.subr.bf16.mxu0 0
  %375 = vmatpush1.bf16.msra.mxu0 0
  %376 = vmatprep.subr.bf16.mxu0 0
  %377 = vmatpush1.bf16.msra.mxu0 0
  %378 = vmatprep.subr.bf16.mxu0 0
  %379 = vmatpush1.bf16.msra.mxu0 0
  %380 = vmatprep.subr.bf16.mxu0 0
  %381 = vmatpush1.bf16.msra.mxu0 0
  %382 = vmatprep.subr.bf16.mxu0 0
  %383 = vmatpush1.bf16.msra.mxu0 0
  %384 = vmatprep.subr.bf16.mxu0 0
  %385 = vmatpush1.bf16.msra.mxu0 0
  %386 = vmatprep.subr.bf16.mxu0 0
  %387 = vmatpush1.bf16.msra.mxu0 0
  %388 = vmatprep.subr.bf16.mxu0 0
  %389 = vmatpush1.bf16.msra.mxu0 0
  %390 = vmatprep.subr.bf16.mxu0 0
  %391 = vmatpush1.bf16.msra.mxu0 0
  %392 = vmatprep.mubr.bf16.mxu0 0
  %393 = vmatmul.mubr.bf16.gmra.mrb[0].mxu0 %v358
  %v394 = vpop.f32.mrb[0].mxu0
  %v395 = vadd.f32 0.0, %v394
  %v396 = vpop.f32.mrb[0].mxu0
  %v397 = vpop.f32.mrb[0].mxu0
  %v398 = vpop.f32.mrb[0].mxu0
  %399 = vdwg.mxu0
  %v401 = vrot.slane %v395, 4
  %v403 = vadd.f32 %v47, %v401
  %v404 = vxor.u32 %v403, 2147483648
  %v405 = vmul.f32 %v404, 1.442695
  %v406 = vpow.pop %v405
  %v407 = vadd.f32 %v406, 1.0
  %v408 = vrcp.pop %v407
  %v409 = vmul.f32 1.0, %v408
  %v410 = vtanh.pop %v403
  %v412 = vrot.slane %v337, 7
  %v414 = vmul.f32 %v409, %v412
  %416 = vrot.lane.b32.xlu0 %v410, 64
  %v417 = vpop.permute.xlu0 %416
  %v419 = vmul.f32 %v409, %v417
  %421 = vrot.lane.b32.xlu0 %v419, 32
  %v422 = vpop.permute.xlu0 %421
  %v424 = vadd.f32 %v414, %v422
  %v425 = vtanh.pop %v424
  %427 = vrot.lane.b32.xlu0 %v425, 64
  %v428 = vpop.permute.xlu0 %427
  %v430 = vmul.f32 %v409, %v428
  %432 = vrot.lane.b32.xlu0 %v430, 32
  %v433 = vpop.permute.xlu0 %432
  %vm435 = vcmask 258052
  %436 = vst.msk [vmem:[#allocation2] sm:$0x10] %vm435, %v433
  %v437 = vpack.c.bf16 %v430, %v430
  %v439 = vrot.slane %v437, 2
  %440 = vrot.lane.b32.xlu0 %v439, 32
  %v441 = vpop.permute.xlu0 %440
  %v443 = vsel %vm98, %v441, 0
  %445 = vmatprep.subr.bf16.mxu0 0
  %446 = vmatpush1.bf16.msra.mxu0 %v94
  %447 = vmatprep.subr.bf16.mxu0 0
  %448 = vmatpush1.bf16.msra.mxu0 %v95
  %449 = vmatprep.subr.bf16.mxu0 0
  %450 = vmatpush1.bf16.msra.mxu0 0
  %451 = vmatprep.subr.bf16.mxu0 0
  %452 = vmatpush1.bf16.msra.mxu0 0
  %453 = vmatprep.subr.bf16.mxu0 0
  %454 = vmatpush1.bf16.msra.mxu0 0
  %455 = vmatprep.subr.bf16.mxu0 0
  %456 = vmatpush1.bf16.msra.mxu0 0
  %457 = vmatprep.subr.bf16.mxu0 0
  %458 = vmatpush1.bf16.msra.mxu0 0
  %459 = vmatprep.subr.bf16.mxu0 0
  %460 = vmatpush1.bf16.msra.mxu0 0
  %461 = vmatprep.subr.bf16.mxu0 0
  %462 = vmatpush1.bf16.msra.mxu0 0
  %463 = vmatprep.subr.bf16.mxu0 0
  %464 = vmatpush1.bf16.msra.mxu0 0
  %465 = vmatprep.subr.bf16.mxu0 0
  %466 = vmatpush1.bf16.msra.mxu0 0
  %467 = vmatprep.subr.bf16.mxu0 0
  %468 = vmatpush1.bf16.msra.mxu0 0
  %469 = vmatprep.subr.bf16.mxu0 0
  %470 = vmatpush1.bf16.msra.mxu0 0
  %471 = vmatprep.subr.bf16.mxu0 0
  %472 = vmatpush1.bf16.msra.mxu0 0
  %473 = vmatprep.subr.bf16.mxu0 0
  %474 = vmatpush1.bf16.msra.mxu0 0
  %475 = vmatprep.subr.bf16.mxu0 0
  %476 = vmatpush1.bf16.msra.mxu0 0
  %477 = vmatprep.mubr.bf16.mxu0 0
  %478 = vmatmul.mubr.bf16.gmra.mrb[0].mxu0 %v443
  %v479 = vpop.f32.mrb[0].mxu0
  %v480 = vadd.f32 0.0, %v479
  %v481 = vpop.f32.mrb[0].mxu0
  %v482 = vpop.f32.mrb[0].mxu0
  %v483 = vpop.f32.mrb[0].mxu0
  %484 = vdwg.mxu0
  %v486 = vrot.slane %v480, 3
  %v488 = vadd.f32 %v47, %v486
  %v489 = vxor.u32 %v488, 2147483648
  %v490 = vmul.f32 %v489, 1.442695
  %v491 = vpow.pop %v490
  %v492 = vadd.f32 %v491, 1.0
  %v493 = vrcp.pop %v492
  %v494 = vmul.f32 1.0, %v493
  %v495 = vtanh.pop %v488
  %v497 = vrot.slane %v424, 7
  %v499 = vmul.f32 %v494, %v497
  %501 = vrot.lane.b32.xlu0 %v495, 64
  %v502 = vpop.permute.xlu0 %501
  %v504 = vmul.f32 %v494, %v502
  %506 = vrot.lane.b32.xlu0 %v504, 32
  %v507 = vpop.permute.xlu0 %506
  %v509 = vadd.f32 %v499, %v507
  %v510 = vtanh.pop %v509
  %512 = vrot.lane.b32.xlu0 %v510, 64
  %v513 = vpop.permute.xlu0 %512
  %v515 = vmul.f32 %v494, %v513
  %517 = vrot.lane.b32.xlu0 %v515, 32
  %v518 = vpop.permute.xlu0 %517
  %vm520 = vcmask 259077
  %521 = vst.msk [vmem:[#allocation2] sm:$0x20] %vm520, %v518
  %v522 = vpack.c.bf16 %v515, %v515
  %v524 = vshrl.u32 %v522, 16
  %v526 = vrot.slane %v524, 2
  %527 = vrot.lane.b32.xlu0 %v526, 32
  %v528 = vpop.permute.xlu0 %527
  %v530 = vsel %vm98, %v528, 0
  %532 = vmatprep.subr.bf16.mxu0 0
  %533 = vmatpush1.bf16.msra.mxu0 %v94
  %534 = vmatprep.subr.bf16.mxu0 0
  %535 = vmatpush1.bf16.msra.mxu0 %v95
  %536 = vmatprep.subr.bf16.mxu0 0
  %537 = vmatpush1.bf16.msra.mxu0 0
  %538 = vmatprep.subr.bf16.mxu0 0
  %539 = vmatpush1.bf16.msra.mxu0 0
  %540 = vmatprep.subr.bf16.mxu0 0
  %541 = vmatpush1.bf16.msra.mxu0 0
  %542 = vmatprep.subr.bf16.mxu0 0
  %543 = vmatpush1.bf16.msra.mxu0 0
  %544 = vmatprep.subr.bf16.mxu0 0
  %545 = vmatpush1.bf16.msra.mxu0 0
  %546 = vmatprep.subr.bf16.mxu0 0
  %547 = vmatpush1.bf16.msra.mxu0 0
  %548 = vmatprep.subr.bf16.mxu0 0
  %549 = vmatpush1.bf16.msra.mxu0 0
  %550 = vmatprep.subr.bf16.mxu0 0
  %551 = vmatpush1.bf16.msra.mxu0 0
  %552 = vmatprep.subr.bf16.mxu0 0
  %553 = vmatpush1.bf16.msra.mxu0 0
  %554 = vmatprep.subr.bf16.mxu0 0
  %555 = vmatpush1.bf16.msra.mxu0 0
  %556 = vmatprep.subr.bf16.mxu0 0
  %557 = vmatpush1.bf16.msra.mxu0 0
  %558 = vmatprep.subr.bf16.mxu0 0
  %559 = vmatpush1.bf16.msra.mxu0 0
  %560 = vmatprep.subr.bf16.mxu0 0
  %561 = vmatpush1.bf16.msra.mxu0 0
  %562 = vmatprep.subr.bf16.mxu0 0
  %563 = vmatpush1.bf16.msra.mxu0 0
  %564 = vmatprep.mubr.bf16.mxu0 0
  %565 = vmatmul.mubr.bf16.gmra.mrb[0].mxu0 %v530
  %v566 = vpop.f32.mrb[0].mxu0
  %v567 = vadd.f32 0.0, %v566
  %v568 = vpop.f32.mrb[0].mxu0
  %v569 = vpop.f32.mrb[0].mxu0
  %v570 = vpop.f32.mrb[0].mxu0
  %571 = vdwg.mxu0
  %v573 = vrot.slane %v567, 2
  %v575 = vadd.f32 %v47, %v573
  %v576 = vxor.u32 %v575, 2147483648
  %v577 = vmul.f32 %v576, 1.442695
  %v578 = vpow.pop %v577
  %v579 = vadd.f32 %v578, 1.0
  %v580 = vrcp.pop %v579
  %v581 = vmul.f32 1.0, %v580
  %v582 = vtanh.pop %v575
  %v584 = vrot.slane %v509, 7
  %v586 = vmul.f32 %v581, %v584
  %588 = vrot.lane.b32.xlu0 %v582, 64
  %v589 = vpop.permute.xlu0 %588
  %v591 = vmul.f32 %v581, %v589
  %593 = vrot.lane.b32.xlu0 %v591, 32
  %v594 = vpop.permute.xlu0 %593
  %v596 = vadd.f32 %v586, %v594
  %v597 = vtanh.pop %v596
  %599 = vrot.lane.b32.xlu0 %v597, 64
  %v600 = vpop.permute.xlu0 %599
  %v602 = vmul.f32 %v581, %v600
  %604 = vrot.lane.b32.xlu0 %v602, 32
  %v605 = vpop.permute.xlu0 %604
  %vm607 = vcmask 260102
  %608 = vst.msk [vmem:[#allocation2] sm:$0x40] %vm607, %v605
  %v609 = vpack.c.bf16 %v602, %v602
  %v611 = vrot.slane %v609, 3
  %612 = vrot.lane.b32.xlu0 %v611, 32
  %v613 = vpop.permute.xlu0 %612
  %v615 = vsel %vm98, %v613, 0
  %617 = vmatprep.subr.bf16.mxu0 0
  %618 = vmatpush1.bf16.msra.mxu0 %v94
  %619 = vmatprep.subr.bf16.mxu0 0
  %620 = vmatpush1.bf16.msra.mxu0 %v95
  %621 = vmatprep.subr.bf16.mxu0 0
  %622 = vmatpush1.bf16.msra.mxu0 0
  %623 = vmatprep.subr.bf16.mxu0 0
  %624 = vmatpush1.bf16.msra.mxu0 0
  %625 = vmatprep.subr.bf16.mxu0 0
  %626 = vmatpush1.bf16.msra.mxu0 0
  %627 = vmatprep.subr.bf16.mxu0 0
  %628 = vmatpush1.bf16.msra.mxu0 0
  %629 = vmatprep.subr.bf16.mxu0 0
  %630 = vmatpush1.bf16.msra.mxu0 0
  %631 = vmatprep.subr.bf16.mxu0 0
  %632 = vmatpush1.bf16.msra.mxu0 0
  %633 = vmatprep.subr.bf16.mxu0 0
  %634 = vmatpush1.bf16.msra.mxu0 0
  %635 = vmatprep.subr.bf16.mxu0 0
  %636 = vmatpush1.bf16.msra.mxu0 0
  %637 = vmatprep.subr.bf16.mxu0 0
  %638 = vmatpush1.bf16.msra.mxu0 0
  %639 = vmatprep.subr.bf16.mxu0 0
  %640 = vmatpush1.bf16.msra.mxu0 0
  %641 = vmatprep.subr.bf16.mxu0 0
  %642 = vmatpush1.bf16.msra.mxu0 0
  %643 = vmatprep.subr.bf16.mxu0 0
  %644 = vmatpush1.bf16.msra.mxu0 0
  %645 = vmatprep.subr.bf16.mxu0 0
  %646 = vmatpush1.bf16.msra.mxu0 0
  %647 = vmatprep.subr.bf16.mxu0 0
  %648 = vmatpush1.bf16.msra.mxu0 0
  %649 = vmatprep.mubr.bf16.mxu0 0
  %650 = vmatmul.mubr.bf16.gmra.mrb[0].mxu0 %v615
  %v651 = vpop.f32.mrb[0].mxu0
  %v652 = vadd.f32 0.0, %v651
  %v653 = vpop.f32.mrb[0].mxu0
  %v654 = vpop.f32.mrb[0].mxu0
  %v655 = vpop.f32.mrb[0].mxu0
  %656 = vdwg.mxu0
  %v658 = vrot.slane %v652, 1
  %v660 = vadd.f32 %v47, %v658
  %v661 = vxor.u32 %v660, 2147483648
  %v662 = vmul.f32 %v661, 1.442695
  %v663 = vpow.pop %v662
  %v664 = vadd.f32 %v663, 1.0
  %v665 = vrcp.pop %v664
  %v666 = vmul.f32 1.0, %v665
  %v667 = vtanh.pop %v660
  %v669 = vrot.slane %v596, 7
  %v671 = vmul.f32 %v666, %v669
  %673 = vrot.lane.b32.xlu0 %v667, 64
  %v674 = vpop.permute.xlu0 %673
  %v676 = vmul.f32 %v666, %v674
  %678 = vrot.lane.b32.xlu0 %v676, 32
  %v679 = vpop.permute.xlu0 %678
  %v681 = vadd.f32 %v671, %v679
  %v682 = vtanh.pop %v681
  %684 = vrot.lane.b32.xlu0 %v682, 64
  %v685 = vpop.permute.xlu0 %684
  %v687 = vmul.f32 %v666, %v685
  %689 = vrot.lane.b32.xlu0 %v687, 32
  %v690 = vpop.permute.xlu0 %689
  %vm692 = vcmask 261127
  %693 = vst.msk [vmem:[#allocation2] sm:$0x80] %vm692, %v690
  %v694 = vld [vmem:[#allocation2] sm:$0xff]
  %v695 = vld [vmem:[%s4] sm:$0xff]
  %v696 = vld [vmem:[%s4 + $0x8] sm:$0xff]
  %v697 = vld [vmem:[%s4 + $0x10] sm:$0xff]
  %v698 = vld [vmem:[%s4 + $0x18] sm:$0xff]
  %v699 = vld [vmem:[#allocation3] sm:$0x1]
  %v701 = vlaneseq
  %v702 = vshrl.u32 %v701, 7
  %v703 = vsub.s32 0, %v702
  %v704 = vrot.slane %v699, %v703
  %v707 = vsel %vm98, %v694, 0
  %709 = vmatprep.subr.mxu0 0.0
  %710 = vmatpush1.msra.mxu0 %v695
  %711 = vmatprep.subr.mxu0 0.0
  %712 = vmatpush1.msra.mxu0 %v696
  %713 = vmatprep.subr.mxu0 0.0
  %714 = vmatpush1.msra.mxu0 %v697
  %715 = vmatprep.subr.mxu0 0.0
  %716 = vmatpush1.msra.mxu0 %v698
  %717 = vmatprep.subr.mxu0 0.0
  %718 = vmatpush1.msra.mxu0 0.0
  %719 = vmatprep.subr.mxu0 0.0
  %720 = vmatpush1.msra.mxu0 0.0
  %721 = vmatprep.subr.mxu0 0.0
  %722 = vmatpush1.msra.mxu0 0.0
  %723 = vmatprep.subr.mxu0 0.0
  %724 = vmatpush1.msra.mxu0 0.0
  %725 = vmatprep.subr.mxu0 0.0
  %726 = vmatpush1.msra.mxu0 0.0
  %727 = vmatprep.subr.mxu0 0.0
  %728 = vmatpush1.msra.mxu0 0.0
  %729 = vmatprep.subr.mxu0 0.0
  %730 = vmatpush1.msra.mxu0 0.0
  %731 = vmatprep.subr.mxu0 0.0
  %732 = vmatpush1.msra.mxu0 0.0
  %733 = vmatprep.subr.mxu0 0.0
  %734 = vmatpush1.msra.mxu0 0.0
  %735 = vmatprep.subr.mxu0 0.0
  %736 = vmatpush1.msra.mxu0 0.0
  %737 = vmatprep.subr.mxu0 0.0
  %738 = vmatpush1.msra.mxu0 0.0
  %739 = vmatprep.subr.mxu0 0.0
  %740 = vmatpush1.msra.mxu0 0.0
  %741 = vmatprep.subr.mxu0 0.0
  %742 = vmatpush1.msra.mxu0 0.0
  %743 = vmatprep.subr.mxu0 0.0
  %744 = vmatpush1.msra.mxu0 0.0
  %745 = vmatprep.subr.mxu0 0.0
  %746 = vmatpush1.msra.mxu0 0.0
  %747 = vmatprep.subr.mxu0 0.0
  %748 = vmatpush1.msra.mxu0 0.0
  %749 = vmatprep.subr.mxu0 0.0
  %750 = vmatpush1.msra.mxu0 0.0
  %751 = vmatprep.subr.mxu0 0.0
  %752 = vmatpush1.msra.mxu0 0.0
  %753 = vmatprep.subr.mxu0 0.0
  %754 = vmatpush1.msra.mxu0 0.0
  %755 = vmatprep.subr.mxu0 0.0
  %756 = vmatpush1.msra.mxu0 0.0
  %757 = vmatprep.subr.mxu0 0.0
  %758 = vmatpush1.msra.mxu0 0.0
  %759 = vmatprep.subr.mxu0 0.0
  %760 = vmatpush1.msra.mxu0 0.0
  %761 = vmatprep.subr.mxu0 0.0
  %762 = vmatpush1.msra.mxu0 0.0
  %763 = vmatprep.subr.mxu0 0.0
  %764 = vmatpush1.msra.mxu0 0.0
  %765 = vmatprep.subr.mxu0 0.0
  %766 = vmatpush1.msra.mxu0 0.0
  %767 = vmatprep.subr.mxu0 0.0
  %768 = vmatpush1.msra.mxu0 0.0
  %769 = vmatprep.subr.mxu0 0.0
  %770 = vmatpush1.msra.mxu0 0.0
  %771 = vmatprep.subr.mxu0 0.0
  %772 = vmatpush1.msra.mxu0 0.0
  %773 = vmatprep.mubr.f32.mxu0 0.0
  %774 = vmatmul.mubr.f32.gmra.mrb[0].mxu0 %v707
  %v775 = vpop.f32.mrb[0].mxu0
  %v776 = vadd.f32 %v704, %v775
  %v777 = vpop.f32.mrb[0].mxu0
  %778 = vdwg.mxu0
  %vm779 = vcmask 7168
  %780 = vst.msk [vmem:[%s6] sm:$0xff] %vm779, %v776
  // Predicated region
  $region26: #{lstm_forward.1} parent=0 // pred_check
    _
  $region27: #{lstm_forward.1} parent=0 // pred_check_branch
    %782 = sbr.rel (0) target = $region29
  $region28: #{lstm_forward.1} parent=0 // pred_region
    _
  $region29: #{lstm_forward.1} parent=0 // pred_fallthru
    _
  // Predicated region
  $region30: #{lstm_forward.1} parent=0 // pred_check
    _
  $region31: #{lstm_forward.1} parent=0 // pred_check_branch
    %784 = sbr.rel (0) target = $region33
  $region32: #{lstm_forward.1} parent=0 // pred_region
    _
  $region33: #{lstm_forward.1} parent=0 // pred_fallthru
    _

</llo_original>
